<compile_context>
chip_gen: v6e
topology: v6e:2x2x1
jax: 0.10.0
libtpu: 0.0.40
codegen_flags: <defaults>
</compile_context>

<pallas_src>
import functools

import jax
import jax.numpy as jnp
from jax.experimental import pallas as pl
from jax.experimental.pallas import tpu as pltpu


def _round_up(x, m):
    return ((x + m - 1) // m) * m


def _chip_info():
    """Returns (physical VMEM bytes, per-input tile cap, default NC, is_v7x)."""
    try:
        kind = jax.devices()[0].device_kind.lower()
    except Exception:
        kind = ""
    if "v7" in kind:
        vmem, tile_cap, nc, v7 = 64 << 20, 4 << 20, 2, True
    elif "v6" in kind:
        vmem, tile_cap, nc, v7 = 128 << 20, 8 << 20, 1, False
    elif "v5" in kind:
        vmem, tile_cap, nc, v7 = 128 << 20, 4 << 20, 1, False
    else:  # unknown chip: be conservative
        vmem, tile_cap, nc, v7 = 64 << 20, 4 << 20, 1, False
    try:
        vmem = int(pltpu.get_tpu_info().vmem_capacity_bytes)
    except Exception:
        pass
    return vmem, tile_cap, nc, v7


def _contrastive_kernel(o1_ref, o2_ref, t_ref, out_ref, acc_ref, *,
                        margin, eps, batch, tb, nt, use_mxu_reduce):
    t_idx = pl.program_id(1)

    # Zero this partition's vector accumulator at the start of its reduction.
    @pl.when(t_idx == 0)
    def _init():
        acc_ref[...] = jnp.zeros_like(acc_ref)

    o1 = o1_ref[...].astype(jnp.float32)
    o2 = o2_ref[...].astype(jnp.float32)
    diff = o2 - o1
    sq = diff * diff

    if use_mxu_reduce:
        # v7x: at ~3.2 TB/s HBM the XLU cross-lane reduce binds; the MXU is
        # otherwise idle, so do the row-sum as a matvec with a ones column.
        ones = jnp.ones((sq.shape[1], 1), jnp.float32)
        distances = jnp.dot(sq, ones, preferred_element_type=jnp.float32)
    else:
        distances = jnp.sum(sq, axis=1, keepdims=True)            # (TB, 1)

    # Ragged-batch mask from *logical* (unclamped) row indices; it also kills
    # duplicate blocks that the index_map clamped onto the last real block.
    row0 = (pl.program_id(0) * nt + t_idx) * tb
    rows = jax.lax.broadcasted_iota(jnp.int32, (tb, 1), 0) + row0
    valid = rows < batch

    distances = jnp.where(valid, distances, 0.0)
    tgt = jnp.where(valid, t_ref[...].astype(jnp.float32), 1.0)
    # masked rows: distances == 0 and tgt == 1  =>  loss contribution == 0

    hinge = jnp.maximum(margin - jnp.sqrt(distances + eps), 0.0)
    losses = 0.5 * (tgt * distances + (1.0 - tgt) * hinge * hinge)  # (TB, 1)

    acc_ref[...] += losses                                          # VPU add / step

    # Write this partition's partial sum once, on its final row tile.
    @pl.when(t_idx == pl.num_programs(1) - 1)
    def _finalize():
        out_ref[...] = jnp.zeros(out_ref.shape, jnp.float32) + jnp.sum(acc_ref[...])


def contrastive_loss(output1, output2, target, *, margin, eps=1e-9,
                     size_average=True, block_rows=None, num_partitions=None,
                     use_mxu_reduce=None):
    """Pallas TPU implementation of ContrastiveLoss.forward.

    output1, output2: (B, D) float arrays (f32 or bf16; upcast in-kernel)
    target:           (B,) array, 1 = same class, 0 = different
    Returns a float32 scalar.
    """
    B, D = output1.shape
    assert output2.shape == (B, D)

    vmem_cap, tile_cap, default_nc, is_v7 = _chip_info()
    if num_partitions is None:
        num_partitions = default_nc
    if use_mxu_reduce is None:
        use_mxu_reduce = is_v7

    NC = max(1, min(int(num_partitions), pl.cdiv(B, 8)))

    itemsize = max(jnp.dtype(output1.dtype).itemsize,
                   jnp.dtype(output2.dtype).itemsize)
    lane_D = _round_up(D, 128)            # VMEM lane padding when D < 128

    # ---- tile sizing: chip VMEM budget, input-dtype bytes ------------------
    if block_rows is None:
        row_bytes = (2 * 2 * lane_D * itemsize   # o1, o2 x double-buffer
                     + 3 * lane_D * 4            # f32 upcast/diff/sq temporaries
                     + 2 * 128 * 4               # target (TB,1) f32 x double-buffer
                     + 128 * 4)                  # (TB,1) f32 accumulator
        rows_by_budget = int(0.55 * vmem_cap) // row_bytes
        rows_by_tile = tile_cap // (lane_D * itemsize)
        block_rows = max(8, min(rows_by_budget, rows_by_tile))

    rows_per_part = pl.cdiv(B, NC)
    TB = min(int(block_rows), _round_up(rows_per_part, 8))
    TB = max(8, (TB // 8) * 8)                   # sublane multiple
    NT = pl.cdiv(rows_per_part, TB)              # row tiles per partition
    total_blocks = pl.cdiv(B, TB)
    last_block = total_blocks - 1

    # Explicit scoped-VMEM limit so the chip default (16/32 MiB) never caps us.
    est_bytes = TB * (2 * 2 * lane_D * itemsize + 3 * lane_D * 4 + 3 * 128 * 4)
    vmem_limit = int(min(0.9 * vmem_cap,
                         max(48 << 20, 1.5 * est_bytes + (8 << 20))))

    t2d = target.astype(jnp.float32).reshape(B, 1)

    kernel = functools.partial(_contrastive_kernel, margin=float(margin),
                               eps=float(eps), batch=B, tb=TB, nt=NT,
                               use_mxu_reduce=bool(use_mxu_reduce))

    # Clamp fully out-of-range row blocks onto the last real block; the
    # in-kernel iota mask zeroes their contribution (no HBM padding copies).
    def row_map(c, t):
        return (jnp.minimum(c * NT + t, last_block), 0)

    out = pl.pallas_call(
        kernel,
        out_shape=jax.ShapeDtypeStruct((NC * 8, 128), jnp.float32),
        grid=(NC, NT),
        in_specs=[
            pl.BlockSpec((TB, D), row_map),      # output1 tile
            pl.BlockSpec((TB, D), row_map),      # output2 tile
            pl.BlockSpec((TB, 1), row_map),      # target column tile
        ],
        out_specs=pl.BlockSpec((8, 128), lambda c, t: (c, 0)),
        scratch_shapes=[pltpu.VMEM((TB, 1), jnp.float32)],
        compiler_params=pltpu.CompilerParams(
            dimension_semantics=("parallel", "arbitrary"),
            vmem_limit_bytes=vmem_limit),
    )(output1, output2, t2d)

    partials = out.reshape(NC, 8, 128)[:, 0, 0]  # one partial per partition
    total = jnp.sum(partials)
    return total / jnp.float32(B) if size_average else total


def _reference(output1, output2, target, margin, eps=1e-9, size_average=True):
    distances = jnp.sum((output2 - output1) ** 2, axis=1)
    hinge = jnp.maximum(margin - jnp.sqrt(distances + eps), 0.0)
    t = target.astype(jnp.float32)
    losses = 0.5 * (t * distances + (1.0 - t) * hinge ** 2)
    return jnp.mean(losses) if size_average else jnp.sum(losses)


if __name__ == "__main__":
    margin = 1.0
    keys = jax.random.split(jax.random.PRNGKey(0), 9)
    k1, k2, k3, k4, k5, k6, k7, k8, k9 = keys

    # Case 1: small f32 batch, single tile.
    B, D = 8, 32
    o1 = jax.random.normal(k1, (B, D), dtype=jnp.float32)
    o2 = jax.random.normal(k2, (B, D), dtype=jnp.float32)
    t = jax.random.bernoulli(k3, p=0.5, shape=(B,)).astype(jnp.int32)
    loss = jax.block_until_ready(contrastive_loss(o1, o2, t, margin=margin))
    ref = _reference(o1, o2, t, margin)
    assert jnp.allclose(loss, ref, rtol=1e-5, atol=1e-6), (loss, ref)

    # Case 2: bf16 inputs, several row tiles per partition.
    B2, D2 = 48, 32
    o1b = jax.random.normal(k4, (B2, D2), dtype=jnp.bfloat16)
    o2b = jax.random.normal(k5, (B2, D2), dtype=jnp.bfloat16)
    tb_ = jax.random.bernoulli(k6, p=0.5, shape=(B2,)).astype(jnp.int32)
    loss2 = jax.block_until_ready(
        contrastive_loss(o1b, o2b, tb_, margin=margin, block_rows=16))
    ref2 = _reference(o1b.astype(jnp.float32), o2b.astype(jnp.float32), tb_, margin)
    assert jnp.allclose(loss2, ref2, rtol=1e-4, atol=1e-5), (loss2, ref2)

    # Case 3: ragged batch + 2 partitions (exercises in-kernel mask + clamp).
    B3, D3 = 37, 32
    o1c = jax.random.normal(k7, (B3, D3), dtype=jnp.float32)
    o2c = jax.random.normal(k8, (B3, D3), dtype=jnp.float32)
    tc = jax.random.bernoulli(k9, p=0.5, shape=(B3,)).astype(jnp.int32)
    loss3 = jax.block_until_ready(
        contrastive_loss(o1c, o2c, tc, margin=margin, block_rows=16,
                         num_partitions=2))
    ref3 = _reference(o1c, o2c, tc, margin)
    assert jnp.allclose(loss3, ref3, rtol=1e-5, atol=1e-6), (loss3, ref3)

    # Case 4: size_average=False (sum) path.
    loss4 = jax.block_until_ready(
        contrastive_loss(o1, o2, t, margin=margin, size_average=False))
    ref4 = _reference(o1, o2, t, margin, size_average=False)
    assert jnp.allclose(loss4, ref4, rtol=1e-5, atol=1e-6), (loss4, ref4)

    print("KERNEL_OK")
</pallas_src>

<mosaic_0001>
module attributes {stable_mosaic.version = 11 : i64} {
  func.func @_contrastive_kernel(%arg0: i32, %arg1: i32, %arg2: memref<8x32xf32, #tpu.memory_space<vmem>>, %arg3: memref<8x32xf32, #tpu.memory_space<vmem>>, %arg4: memref<8x1xf32, #tpu.memory_space<vmem>>, %arg5: memref<8x128xf32, #tpu.memory_space<vmem>>, %arg6: memref<8x1xf32, #tpu.memory_space<vmem>>) attributes {dimension_semantics = [#tpu.dimension_semantics<parallel>, #tpu.dimension_semantics<arbitrary>], iteration_bounds = array<i64: 1, 1>, scalar_prefetch = 0 : i64, scratch_operands = 1 : i64, tpu.core_type = #tpu.core_type<tc>, window_params = [{transform_indices = @transform_0, window_bounds = array<i64: 8, 32>}, {transform_indices = @transform_1, window_bounds = array<i64: 8, 32>}, {transform_indices = @transform_2, window_bounds = array<i64: 8, 1>}, {transform_indices = @transform_3, window_bounds = array<i64: 8, 128>}]} {
    %c0_i32 = arith.constant 0 : i32
    %0 = arith.cmpi eq, %arg1, %c0_i32 : i32
    %1 = arith.extui %0 : i1 to i32
    %c0_i32_0 = arith.constant 0 : i32
    %2 = arith.cmpi ne, %1, %c0_i32_0 : i32
    scf.if %2 {
      %cst_20 = arith.constant 0.000000e+00 : f32
      %43 = vector.broadcast %cst_20 : f32 to vector<8x1xf32>
      %c0_21 = arith.constant 0 : index
      %c0_22 = arith.constant 0 : index
      %44 = vector.load %arg6[%c0_21, %c0_22] : memref<8x1xf32, #tpu.memory_space<vmem>>, vector<8x1xf32>
      tpu.vector_store %arg6[%c0_21, %c0_22], %43 {strides = array<i32>} : memref<8x1xf32, #tpu.memory_space<vmem>>, vector<8x1xf32>,
    } else {
    }
    %c0 = arith.constant 0 : index
    %c0_1 = arith.constant 0 : index
    %3 = vector.load %arg2[%c0, %c0_1] : memref<8x32xf32, #tpu.memory_space<vmem>>, vector<8x32xf32>
    %c0_2 = arith.constant 0 : index
    %c0_3 = arith.constant 0 : index
    %4 = vector.load %arg3[%c0_2, %c0_3] : memref<8x32xf32, #tpu.memory_space<vmem>>, vector<8x32xf32>
    %5 = arith.subf %4, %3 : vector<8x32xf32>
    %6 = arith.mulf %5, %5 : vector<8x32xf32>
    %cst = arith.constant dense<0.000000e+00> : vector<8xf32>
    %7 = vector.multi_reduction <add>, %6, %cst [1] : vector<8x32xf32> to vector<8xf32>
    %8 = vector.shape_cast %7 : vector<8xf32> to vector<8x1xf32>
    %c1_i32 = arith.constant 1 : i32
    %9 = arith.muli %arg0, %c1_i32 : i32
    %10 = arith.addi %9, %arg1 : i32
    %c8_i32 = arith.constant 8 : i32
    %11 = arith.muli %10, %c8_i32 : i32
    %12 = tpu.iota {dimensions = array<i32: 0>} : vector<8x1xi32>
    %13 = vector.broadcast %11 : i32 to vector<8x1xi32>
    %14 = arith.addi %12, %13 : vector<8x1xi32>
    %c8_i32_4 = arith.constant 8 : i32
    %15 = vector.broadcast %c8_i32_4 : i32 to vector<8x1xi32>
    %16 = arith.cmpi slt, %14, %15 : vector<8x1xi32>
    %cst_5 = arith.constant 0.000000e+00 : f32
    %17 = vector.broadcast %cst_5 : f32 to vector<8x1xf32>
    %18 = arith.select %16, %8, %17 : vector<8x1xi1>, vector<8x1xf32>
    %c0_6 = arith.constant 0 : index
    %c0_7 = arith.constant 0 : index
    %19 = vector.load %arg4[%c0_6, %c0_7] : memref<8x1xf32, #tpu.memory_space<vmem>>, vector<8x1xf32>
    %cst_8 = arith.constant 1.000000e+00 : f32
    %20 = vector.broadcast %cst_8 : f32 to vector<8x1xf32>
    %21 = arith.select %16, %19, %20 : vector<8x1xi1>, vector<8x1xf32>
    %cst_9 = arith.constant 9.99999971E-10 : f32
    %22 = vector.broadcast %cst_9 : f32 to vector<8x1xf32>
    %23 = arith.addf %18, %22 : vector<8x1xf32>
    %24 = math.sqrt %23 : vector<8x1xf32>
    %cst_10 = arith.constant 1.000000e+00 : f32
    %25 = vector.broadcast %cst_10 : f32 to vector<8x1xf32>
    %26 = arith.subf %25, %24 : vector<8x1xf32>
    %cst_11 = arith.constant 0.000000e+00 : f32
    %27 = vector.broadcast %cst_11 : f32 to vector<8x1xf32>
    %28 = arith.maximumf %26, %27 : vector<8x1xf32>
    %29 = arith.mulf %21, %18 : vector<8x1xf32>
    %cst_12 = arith.constant 1.000000e+00 : f32
    %30 = vector.broadcast %cst_12 : f32 to vector<8x1xf32>
    %31 = arith.subf %30, %21 : vector<8x1xf32>
    %32 = arith.mulf %31, %28 : vector<8x1xf32>
    %33 = arith.mulf %32, %28 : vector<8x1xf32>
    %34 = arith.addf %29, %33 : vector<8x1xf32>
    %cst_13 = arith.constant 5.000000e-01 : f32
    %35 = vector.broadcast %cst_13 : f32 to vector<8x1xf32>
    %36 = arith.mulf %35, %34 : vector<8x1xf32>
    %c0_14 = arith.constant 0 : index
    %c0_15 = arith.constant 0 : index
    %37 = vector.load %arg6[%c0_14, %c0_15] : memref<8x1xf32, #tpu.memory_space<vmem>>, vector<8x1xf32>
    %38 = arith.addf %37, %36 : vector<8x1xf32>
    %c0_16 = arith.constant 0 : index
    %c0_17 = arith.constant 0 : index
    %39 = vector.load %arg6[%c0_16, %c0_17] : memref<8x1xf32, #tpu.memory_space<vmem>>, vector<8x1xf32>
    tpu.vector_store %arg6[%c0_16, %c0_17], %38 {strides = array<i32>} : memref<8x1xf32, #tpu.memory_space<vmem>>, vector<8x1xf32>,
    %c0_i32_18 = arith.constant 0 : i32
    %40 = arith.cmpi eq, %arg1, %c0_i32_18 : i32
    %41 = arith.extui %40 : i1 to i32
    %c0_i32_19 = arith.constant 0 : i32
    %42 = arith.cmpi ne, %41, %c0_i32_19 : i32
    scf.if %42 {
      %cst_20 = arith.constant 0.000000e+00 : f32
      %43 = vector.broadcast %cst_20 : f32 to vector<8x128xf32>
      %c0_21 = arith.constant 0 : index
      %c0_22 = arith.constant 0 : index
      %44 = vector.load %arg6[%c0_21, %c0_22] : memref<8x1xf32, #tpu.memory_space<vmem>>, vector<8x1xf32>
      %45 = vector.shape_cast %44 : vector<8x1xf32> to vector<1x8x1xf32>
      %cst_23 = arith.constant dense<0.000000e+00> : vector<1xf32>
      %46 = vector.multi_reduction <add>, %45, %cst_23 [1, 2] : vector<1x8x1xf32> to vector<1xf32>
      %47 = vector.shape_cast %46 : vector<1xf32> to vector<1x1x1xf32>
      %48 = vector.extract %47[0, 0, 0] : f32 from vector<1x1x1xf32>
      %49 = vector.broadcast %48 : f32 to vector<8x128xf32>
      %50 = arith.addf %43, %49 : vector<8x128xf32>
      %c0_24 = arith.constant 0 : index
      %c0_25 = arith.constant 0 : index
      %51 = vector.load %arg5[%c0_24, %c0_25] : memref<8x128xf32, #tpu.memory_space<vmem>>, vector<8x128xf32>
      tpu.vector_store %arg5[%c0_24, %c0_25], %50 {strides = array<i32>} : memref<8x128xf32, #tpu.memory_space<vmem>>, vector<8x128xf32>,
    } else {
    }
    return
  }
  func.func @transform_0(%arg0: i32, %arg1: i32) -> (i32, i32) {
    %c1_i32 = arith.constant 1 : i32
    %0 = arith.muli %arg0, %c1_i32 : i32
    %1 = arith.addi %0, %arg1 : i32
    %c0_i32 = arith.constant 0 : i32
    %2 = arith.minsi %1, %c0_i32 : i32
    %c0_i32_0 = arith.constant 0 : i32
    %c0_i32_1 = arith.constant 0 : i32
    return %2, %c0_i32_0 : i32, i32
  }
  func.func @transform_1(%arg0: i32, %arg1: i32) -> (i32, i32) {
    %c1_i32 = arith.constant 1 : i32
    %0 = arith.muli %arg0, %c1_i32 : i32
    %1 = arith.addi %0, %arg1 : i32
    %c0_i32 = arith.constant 0 : i32
    %2 = arith.minsi %1, %c0_i32 : i32
    %c0_i32_0 = arith.constant 0 : i32
    %c0_i32_1 = arith.constant 0 : i32
    return %2, %c0_i32_0 : i32, i32
  }
  func.func @transform_2(%arg0: i32, %arg1: i32) -> (i32, i32) {
    %c1_i32 = arith.constant 1 : i32
    %0 = arith.muli %arg0, %c1_i32 : i32
    %1 = arith.addi %0, %arg1 : i32
    %c0_i32 = arith.constant 0 : i32
    %2 = arith.minsi %1, %c0_i32 : i32
    %c0_i32_0 = arith.constant 0 : i32
    %c0_i32_1 = arith.constant 0 : i32
    return %2, %c0_i32_0 : i32, i32
  }
  func.func @transform_3(%arg0: i32, %arg1: i32) -> (i32, i32) {
    %c0_i32 = arith.constant 0 : i32
    %c0_i32_0 = arith.constant 0 : i32
    return %arg0, %c0_i32 : i32, i32
  }
}

</mosaic_0001>

<llo_original>
// kernel: tpu_custom_call.1
$region0: #{tpu_custom_call.1}
  #allocation0 [shape = 'u32[]', space=smem, size = 0x4, offset = 0x4, fixed_abs, tag = 'smem constant byte address 0x4 - core index']
  #allocation1 [shape = 'u32[144,128]{1,0:T(1,128)}', space=vmem, size = 0x12000, scoped, tag = 'internal scratch']
  #allocation2 [shape = 'f32[8,1]{1,0:T(8,128)}', space=vmem, size = 0x1000, scoped, tag = 'scratch operand']
  %s0 = inlined_call_operand.vmem [shape: f32[8,32], index: 0, kind: input, shape index: {}]
  %s1 = inlined_call_operand.hbm [shape: f32[8,32], index: 1, kind: input, shape index: {}]
  %s2 = inlined_call_operand.vmem [shape: f32[8,1], index: 2, kind: input, shape index: {}]
  %s3 = inlined_call_operand.hbm [shape: f32[8,128], index: 3, kind: output, shape index: {}]
  %s4 = sld [smem:[#allocation0]]
  $region34: #{tpu_custom_call.1} parent=0
    _
  %s6 = ssub.s32 1, %s4
  %s7 = scalar_select 0, %s6, %s4
  $region1: #{tpu_custom_call.1} parent=0
    #allocation3 [shape = 'u8[4096]{0}', space=vmem, size = 0x1000, scoped, tag = 'input window, operand 1, single buffered']
    #allocation4 [shape = 's32[1]{0}', space=sflag, size = 0x4, scoped, tag = 'scoped memory for tpu_custom_call.1']
    #allocation5 [shape = 's32[1]{0}', space=sflag, size = 0x4, scoped, tag = 'scoped memory for tpu_custom_call.1']
    #allocation6 [shape = 'u8[4096]{0}', space=vmem, size = 0x1000, scoped, tag = 'output window, operand 0, single buffered']
    %8 = vsyncpa [#allocation4], 0
    %9 = vsyncpa [#allocation5], 0
    // Predicated region
    $region2: #{tpu_custom_call.1} parent=1 // pred_check
      _
    $region3: #{tpu_custom_call.1} parent=1 // pred_check_branch
      %11 = sbr.rel (0) target = $region5
    $region4: #{tpu_custom_call.1} parent=1 // pred_region
      %s12 = sadd.s32 0, 0
      %p13 = scmp.lt.s32.totalorder %s12, 0
      %s14 = scalar_select %p13, %s12, 0
      %p15 = scmp.lt.s32.totalorder %s14, 0
      %s16 = scalar_select %p15, %s14, 0
      %s17 = smul.addr %s16, 8
      %s18 = scalar_lea.vmem %s0, %s17
      %s19 = sadd.s32 0, 0
      %p20 = scmp.lt.s32.totalorder %s19, 0
      %s21 = scalar_select %p20, %s19, 0
    $region5: #{tpu_custom_call.1} parent=1 // pred_fallthru
      _
    // Predicated region
    $region6: #{tpu_custom_call.1} parent=1 // pred_check
      _
    $region7: #{tpu_custom_call.1} parent=1 // pred_check_branch
      %23 = sbr.rel (0) target = $region9
    $region8: #{tpu_custom_call.1} parent=1 // pred_region
      %s24 = sadd.s32 0, 0
      %p25 = scmp.lt.s32.totalorder %s24, 0
      %s26 = scalar_select %p25, %s24, 0
      %s28 = ssub.s32 128, 128
      %29 = vsyncadd [#allocation4], %s28
      %s30 = smul.addr %s26, 128
      %s31 = scalar_lea.hbm %s1, %s30
      %s33 = sshll.u32 [#allocation3], 4
      %s34 = int_to_ptr.vmem [resolvable:$true] %s33
      %36 = dma.hbm_to_vmem [thread:$0]  %s31, 128, %s34, [#allocation4]
    $region9: #{tpu_custom_call.1} parent=1 // pred_fallthru
      _
    // Predicated region
    $region10: #{tpu_custom_call.1} parent=1 // pred_check
      _
    $region11: #{tpu_custom_call.1} parent=1 // pred_check_branch
      %38 = sbr.rel (0) target = $region13
    $region12: #{tpu_custom_call.1} parent=1 // pred_region
      %s39 = sadd.s32 0, 0
      %p40 = scmp.lt.s32.totalorder %s39, 0
      %s41 = scalar_select %p40, %s39, 0
      %p42 = scmp.lt.s32.totalorder %s41, 0
      %s43 = scalar_select %p42, %s41, 0
      %s44 = smul.addr %s43, 8
      %s45 = scalar_lea.vmem %s2, %s44
      %s46 = sadd.s32 0, 0
      %p47 = scmp.lt.s32.totalorder %s46, 0
      %s48 = scalar_select %p47, %s46, 0
    $region13: #{tpu_custom_call.1} parent=1 // pred_fallthru
      _
    // Predicated region
    $region14: #{tpu_custom_call.1} parent=1 // pred_check
      _
    $region15: #{tpu_custom_call.1} parent=1 // pred_check_branch
      %50 = sbr.rel (0) target = $region17
    $region16: #{tpu_custom_call.1} parent=1 // pred_region
      %51 = dma.done [#allocation4], 128
    $region17: #{tpu_custom_call.1} parent=1 // pred_fallthru
      _
    %s52 = sadd.s32 0, 0
    %p53 = scmp.lt.s32.totalorder %s52, 0
    %s54 = scalar_select %p53, %s52, 0
    %p55 = scmp.lt.s32.totalorder %s54, 0
    %s56 = scalar_select %p55, %s54, 0
    %s57 = smul.addr %s56, 8
    %s58 = scalar_lea.vmem %s0, %s57
    %s59 = sadd.s32 0, 0
    %p60 = scmp.lt.s32.totalorder %s59, 0
    %s61 = scalar_select %p60, %s59, 0
    %p62 = scmp.lt.s32.totalorder %s61, 0
    %s63 = scalar_select %p62, %s61, 0
    %s64 = smul.addr %s63, 8
    %s65 = scalar_lea.vmem %s2, %s64
    %s66 = sadd.s32 0, 0
    %p67 = scmp.lt.s32.totalorder %s66, 0
    %s68 = scalar_select %p67, %s66, 0
    %p69 = scmp.lt.s32.totalorder %s68, 0
    %s70 = scalar_select %p69, %s68, 0
    %s71 = smul.addr %s70, 8
    %s72 = scalar_lea.vmem %s0, %s71
    %s73 = sadd.s32 0, 0
    %p74 = scmp.lt.s32.totalorder %s73, 0
    %s75 = scalar_select %p74, %s73, 0
    %s76 = sadd.s32 0, 0
    %p77 = scmp.lt.s32.totalorder %s76, 0
    %s78 = scalar_select %p77, %s76, 0
    %s79 = sadd.s32 0, 0
    %p80 = scmp.lt.s32.totalorder %s79, 0
    %s81 = scalar_select %p80, %s79, 0
    %p82 = scmp.lt.s32.totalorder %s81, 0
    %s83 = scalar_select %p82, %s81, 0
    %s84 = smul.addr %s83, 8
    %s85 = scalar_lea.vmem %s2, %s84
    %s86 = sadd.s32 0, 0
    %p87 = scmp.lt.s32.totalorder %s86, 0
    %s88 = scalar_select %p87, %s86, 0
    %p89 = scmp.eq.s32.totalorder 0, 0
    // Predicated region
    $region18: #{tpu_custom_call.1} parent=1 // pred_check
      %p90 = pneg %p89
    $region19: #{tpu_custom_call.1} parent=1 // pred_check_branch
      %92 = sbr.rel (%p90) target = $region21
    $region20: #{tpu_custom_call.1} parent=1 // pred_region
      %vm93 = vcmask 7168
      %94 = vst.msk [vmem:[#allocation2] sm:$0xff] %vm93, 0.0
    $region21: #{tpu_custom_call.1} parent=1 // pred_fallthru
      _
    %v95 = vld [vmem:[%s72] sm:$0xff]
    %v96 = vld [vmem:[#allocation3] sm:$0xff]
    %v97 = vsub.f32 %v96, %v95
    %v98 = vmul.f32 %v97, %v97
    %vm99 = vcmask 261120
    %v100 = vsel %vm99, %v98, 0.0
    %101 = vadd.xlane.f32.xlu0 %v100
    %v102 = vpop.xlane.xlu0 %101
    %s103 = sadd.s32 0, 0
    %s104 = smul.u32 %s103, 8
    %v105 = vlaneseq
    %v106 = vshrl.u32 %v105, 7
    %v107 = vstv %s104
    %v108 = vadd.s32 %v106, %v107
    %vm109 = vcmp.lt.s32.totalorder %v108, 8
    %v110 = vsel %vm109, %v102, 0.0
    %v111 = vld [vmem:[%s85] sm:$0xff]
    %v112 = vsel %vm109, %v111, 1.0
    %v113 = vadd.f32 %v110, 1e-09
    %v114 = vrsqrt.pop %v113
    %v115 = vmul.f32 %v113, %v114
    %vm116 = vcmp.eq.f32.partialorder %v113, inf
    %v117 = vsel %vm116, %v113, %v115
    %vm118 = vcmp.eq.f32.partialorder %v113, 0.0
    %v119 = vand.u32 %v113, 2147483648
    %v120 = vsel %vm118, %v119, %v117
    %v121 = vsub.f32 1.0, %v120
    %v122 = vmax.f32 %v121, 0.0
    %v123 = vmul.f32 %v112, %v110
    %v124 = vsub.f32 1.0, %v112
    %v125 = vmul.f32 %v124, %v122
    %v126 = vmul.f32 %v125, %v122
    %v127 = vadd.f32 %v123, %v126
    %v128 = vmul.f32 %v127, 0.5
    %v129 = vld [vmem:[#allocation2] sm:$0xff]
    %v130 = vadd.f32 %v129, %v128
    %vm131 = vcmask 7168
    %132 = vst.msk [vmem:[#allocation2] sm:$0xff] %vm131, %v130
    // Predicated region
    $region22: #{tpu_custom_call.1} parent=1 // pred_check
      %p133 = pneg %p89
    $region23: #{tpu_custom_call.1} parent=1 // pred_check_branch
      %135 = sbr.rel (%p133) target = $region25
    $region24: #{tpu_custom_call.1} parent=1 // pred_region
      %v136 = vld [vmem:[#allocation2] sm:$0xff]
      %v137 = vsel %vm131, %v136, 0.0
      %138 = vadd.xlane.f32.xlu0 %v137
      %v139 = vpop.xlane.xlu0 %138
      %v140 = vrot.slane %v139, 4
      %v141 = vadd.f32 %v139, %v140
      %v142 = vrot.slane %v141, 2
      %v143 = vadd.f32 %v141, %v142
      %v144 = vrot.slane %v143, 1
      %v145 = vadd.f32 %v143, %v144
      %s146 = vtos %v145
      %v147 = vstv %s146
      %v148 = vadd.f32 %v147, 0.0
      %149 = vst [vmem:[#allocation6] sm:$0xff] %v148
    $region25: #{tpu_custom_call.1} parent=1 // pred_fallthru
      _
    // Predicated region
    $region26: #{tpu_custom_call.1} parent=1 // pred_check
      _
    $region27: #{tpu_custom_call.1} parent=1 // pred_check_branch
      %151 = sbr.rel (0) target = $region29
    $region28: #{tpu_custom_call.1} parent=1 // pred_region
      %s153 = ssub.s32 128, 128
      %154 = vsyncadd [#allocation5], %s153
      %s156 = sshll.u32 [#allocation6], 4
      %s157 = int_to_ptr.vmem [resolvable:$true] %s156
      %159 = dma.vmem_to_hbm [thread:$0]  %s157, 128, %s3, [#allocation5]
    $region29: #{tpu_custom_call.1} parent=1 // pred_fallthru
      _
    // Predicated region
    $region30: #{tpu_custom_call.1} parent=1 // pred_check
      _
    $region31: #{tpu_custom_call.1} parent=1 // pred_check_branch
      %161 = sbr.rel (0) target = $region33
    $region32: #{tpu_custom_call.1} parent=1 // pred_region
      %162 = dma.done [#allocation5], 128
    $region33: #{tpu_custom_call.1} parent=1 // pred_fallthru
      _
    %163 = vsyncpa [#allocation4], 1
    %164 = vsyncpa [#allocation5], 1

</llo_original>
